<compile_context>
chip_gen: v5e
topology: v5e:2x2
jax: 0.10.0
libtpu: 0.0.40
codegen_flags: <defaults>
</compile_context>

<pallas_src>
import functools

import jax
import jax.numpy as jnp
from jax import lax
from jax.experimental import pallas as pl
from jax.experimental.pallas import tpu as pltpu


_LANES = 128


def _select_tiling():
    """Return (target input-block bytes, vmem_limit_bytes) per TPU generation."""
    vmem_cap = 64 * 1024 * 1024  # conservative default (v7x per-TC VMEM)
    try:
        vmem_cap = int(pltpu.get_tpu_info().vmem_capacity_bytes)
    except Exception:
        pass
    if vmem_cap >= 100 * 1024 * 1024:            # v5e / v6e: 128 MiB physical VMEM
        return 6 * 1024 * 1024, 64 * 1024 * 1024
    return 2 * 1024 * 1024, 32 * 1024 * 1024     # v7x: 64 MiB per TensorCore


def _pick_block_rows(nc, target_rows):
    """Pick the leading-axis block size.

    Prefer an exact divisor of nc close to the byte-derived target (no ragged
    tail, no in-kernel masking); otherwise keep the target and mask in-kernel.
    """
    target = max(1, min(nc, target_rows))
    best = None
    for cand in range(target, 0, -1):
        if nc % cand == 0:
            best = cand
            break
    if best is not None and 2 * best >= target:
        return best, False          # exact divisor near the target: no masking
    return target, True             # ragged: mask invalid leading rows in-kernel


def _grad_block_kernel(x_ref, oh_ref, ow_ref, *, penalty, block_rows, nc,
                       ragged, use_roll_w):
    """One grid step: partial sums of penalty(dH) and penalty(dW) for a block.

    x_ref        : (B, H, W) VMEM tile, original input dtype.
    oh/ow_ref    : (1, 1, 128) f32 tiles (this step's partial sums, broadcast
                   across lanes).  Only [:, 0, 0] is read back in JAX.
    """
    x = x_ref[...]                                   # keep input dtype (bf16 stays bf16)

    if ragged:
        # Zero the leading rows past the true extent of the flattened (N*C)
        # axis.  Diffs never cross axis 0 and penalty(0) == 0 for l1/l2, so
        # zeroed rows contribute exactly 0 to both sums.
        valid = nc - pl.program_id(0) * block_rows
        row = lax.broadcasted_iota(jnp.int32, x.shape, 0)
        x = jnp.where(row < valid, x, jnp.zeros_like(x))

    def pen_sum(d):
        # Diff arrives in the input dtype; widen only at square / accumulate.
        if penalty == "l1":
            return jnp.sum(jnp.abs(d), dtype=jnp.float32)
        d32 = d.astype(jnp.float32)
        return jnp.sum(d32 * d32)

    h = x.shape[1]
    w = x.shape[2]

    # H (sublane) direction: slice diff in the input dtype.
    s_h = pen_sum(x[:, 1:, :] - x[:, :-1, :])

    # W (lane) direction.
    if use_roll_w:
        # Full-tile roll-diff (XLU shift) + wrap-around edge correction.  The
        # wrap term's penalty equals penalty(x[...,0] - x[...,W-1]) regardless
        # of the roll direction, so the correction is direction-agnostic.
        dw_full = pltpu.roll(x, shift=1, axis=2) - x
        wrap_w = x[:, :, 0:1] - x[:, :, w - 1:w]
        s_w = pen_sum(dw_full) - pen_sum(wrap_w)
    else:
        s_w = pen_sum(x[:, :, 1:] - x[:, :, :-1])

    # Lane-aligned, full-block stores of the two scalars (no iota/select).
    oh_ref[...] = jnp.full((1, 1, _LANES), s_h, dtype=jnp.float32)
    ow_ref[...] = jnp.full((1, 1, _LANES), s_w, dtype=jnp.float32)


def grad_loss(pred, penalty="l2", *, block_bytes=None):
    """Pallas equivalent of Grad(penalty).forward(pred) for NCHW input."""
    assert penalty in ("l1", "l2"), penalty
    assert pred.ndim == 4, "this kernel implements the 2-D spatial case (NCHW)"
    n, c, h, w = pred.shape
    assert h >= 2 and w >= 2, "spatial dims must be >= 2 for a gradient loss"
    ndims = pred.ndim - 2  # = 2

    nc = n * c
    # Keep the original dtype through the DMA (no wrapper upcast / no jnp.pad).
    x = pred.reshape(nc, h, w)

    target_bytes, vmem_limit = _select_tiling()
    if block_bytes is not None:
        target_bytes = block_bytes

    itemsize = jnp.dtype(pred.dtype).itemsize
    slice_bytes = h * w * itemsize
    target_rows = max(1, target_bytes // slice_bytes)
    b, ragged = _pick_block_rows(nc, target_rows)
    g = pl.cdiv(nc, b)

    use_roll_w = (w % _LANES) == 0   # lane-aligned fast path

    kernel = functools.partial(
        _grad_block_kernel, penalty=penalty, block_rows=b, nc=nc,
        ragged=ragged, use_roll_w=use_roll_w)

    part_h, part_w = pl.pallas_call(
        kernel,
        out_shape=(jax.ShapeDtypeStruct((g, 1, _LANES), jnp.float32),
                   jax.ShapeDtypeStruct((g, 1, _LANES), jnp.float32)),
        grid=(g,),
        in_specs=[pl.BlockSpec((b, h, w), lambda i: (i, 0, 0))],
        out_specs=(pl.BlockSpec((1, 1, _LANES), lambda i: (i, 0, 0)),
                   pl.BlockSpec((1, 1, _LANES), lambda i: (i, 0, 0))),
        compiler_params=pltpu.CompilerParams(
            # Every step writes its own output block -> fully parallel; this
            # shards the grid across both TensorCores on v7x and is harmless
            # on single-TC v5e/v6e.
            dimension_semantics=("parallel",),
            vmem_limit_bytes=vmem_limit,
        ),
    )(x)

    # Tiny final reduction in JAX (g is small); lanes all hold the same value.
    s_h = jnp.sum(part_h[:, 0, 0])
    s_w = jnp.sum(part_w[:, 0, 0])

    n_h = nc * (h - 1) * w   # element count of the H-difference tensor
    n_w = nc * h * (w - 1)   # element count of the W-difference tensor
    df = s_h / jnp.float32(n_h) / ndims + s_w / jnp.float32(n_w) / ndims
    return jnp.reshape(df.astype(jnp.float32), (1,))


def _grad_loss_ref(pred, penalty="l2"):
    """Pure-JAX reference for verification."""
    x = pred.astype(jnp.float32)
    dh = x[:, :, 1:, :] - x[:, :, :-1, :]
    dw = x[:, :, :, 1:] - x[:, :, :, :-1]
    if penalty == "l1":
        ph, pw = jnp.abs(dh), jnp.abs(dw)
    else:
        ph, pw = dh * dh, dw * dw
    ndims = 2
    return jnp.reshape(jnp.mean(ph) / ndims + jnp.mean(pw) / ndims, (1,))


if __name__ == "__main__":
    key = jax.random.PRNGKey(0)
    k1, k2, k3 = jax.random.split(key, 3)

    # 1) Small NCHW f32 input (e.g. a flow field), both penalties.
    #    Exercises the slice fallback path (W=16 is not lane-aligned).
    x_small = jax.random.normal(k1, (2, 4, 16, 16), dtype=jnp.float32)
    for pen in ("l2", "l1"):
        out = jax.block_until_ready(grad_loss(x_small, penalty=pen))
        ref = _grad_loss_ref(x_small, penalty=pen)
        assert out.shape == (1,) and out.dtype == jnp.float32
        assert jnp.allclose(out, ref, rtol=1e-5, atol=1e-6), (pen, out, ref)

    # 2) bf16 input with lane-aligned W: exercises bf16-native diffs (f32
    #    accumulation) and the roll + edge-correction W path.  Tolerance is
    #    loose because the reference differences in f32 while the kernel
    #    (matching the torch module) differences in the input dtype.
    x_med = jax.random.normal(k2, (4, 50, 64, 128), dtype=jnp.bfloat16)
    out = jax.block_until_ready(grad_loss(x_med, penalty="l2"))
    ref = _grad_loss_ref(x_med, penalty="l2")
    assert jnp.allclose(out, ref, rtol=1e-2, atol=1e-5), (out, ref)

    # 3) Ragged leading axis (N*C = 7, prime) with a forced tiny block:
    #    exercises the multi-block grid and the in-kernel zero-masking path
    #    (no wrapper-side padding).
    x_rag = jax.random.normal(k3, (7, 1, 8, 128), dtype=jnp.float32)
    out = jax.block_until_ready(
        grad_loss(x_rag, penalty="l1", block_bytes=3 * 8 * 128 * 4))
    ref = _grad_loss_ref(x_rag, penalty="l1")
    assert jnp.allclose(out, ref, rtol=1e-5, atol=1e-6), (out, ref)

    print("KERNEL_OK")
</pallas_src>

<mosaic_0001>
module attributes {stable_mosaic.version = 11 : i64} {
  func.func @_grad_block_kernel(%arg0: i32, %arg1: memref<8x16x16xf32, #tpu.memory_space<vmem>>, %arg2: memref<1x1x128xf32, #tpu.memory_space<vmem>>, %arg3: memref<1x1x128xf32, #tpu.memory_space<vmem>>) attributes {dimension_semantics = [#tpu.dimension_semantics<parallel>], iteration_bounds = array<i64: 1>, scalar_prefetch = 0 : i64, scratch_operands = 0 : i64, tpu.core_type = #tpu.core_type<tc>, window_params = [{transform_indices = @transform_0, window_bounds = array<i64: 8, 16, 16>}, {transform_indices = @transform_1, window_bounds = array<i64: 1, 1, 128>}, {transform_indices = @transform_2, window_bounds = array<i64: 1, 1, 128>}]} {
    %c0 = arith.constant 0 : index
    %c0_0 = arith.constant 0 : index
    %c0_1 = arith.constant 0 : index
    %0 = vector.load %arg1[%c0, %c0_0, %c0_1] : memref<8x16x16xf32, #tpu.memory_space<vmem>>, vector<8x16x16xf32>
    %1 = vector.extract_strided_slice %0 {offsets = [0, 1, 0], sizes = [8, 15, 16], strides = [1, 1, 1]} : vector<8x16x16xf32> to vector<8x15x16xf32>
    %2 = vector.extract_strided_slice %0 {offsets = [0, 0, 0], sizes = [8, 15, 16], strides = [1, 1, 1]} : vector<8x16x16xf32> to vector<8x15x16xf32>
    %3 = arith.subf %1, %2 : vector<8x15x16xf32>
    %4 = arith.mulf %3, %3 : vector<8x15x16xf32>
    %5 = vector.shape_cast %4 : vector<8x15x16xf32> to vector<1x8x15x16xf32>
    %cst = arith.constant dense<0.000000e+00> : vector<1xf32>
    %6 = vector.multi_reduction <add>, %5, %cst [1, 2, 3] : vector<1x8x15x16xf32> to vector<1xf32>
    %7 = vector.shape_cast %6 : vector<1xf32> to vector<1x1x1x1xf32>
    %8 = vector.extract %7[0, 0, 0, 0] : f32 from vector<1x1x1x1xf32>
    %9 = vector.extract_strided_slice %0 {offsets = [0, 0, 1], sizes = [8, 16, 15], strides = [1, 1, 1]} : vector<8x16x16xf32> to vector<8x16x15xf32>
    %10 = vector.extract_strided_slice %0 {offsets = [0, 0, 0], sizes = [8, 16, 15], strides = [1, 1, 1]} : vector<8x16x16xf32> to vector<8x16x15xf32>
    %11 = arith.subf %9, %10 : vector<8x16x15xf32>
    %12 = arith.mulf %11, %11 : vector<8x16x15xf32>
    %13 = vector.shape_cast %12 : vector<8x16x15xf32> to vector<1x8x16x15xf32>
    %cst_2 = arith.constant dense<0.000000e+00> : vector<1xf32>
    %14 = vector.multi_reduction <add>, %13, %cst_2 [1, 2, 3] : vector<1x8x16x15xf32> to vector<1xf32>
    %15 = vector.shape_cast %14 : vector<1xf32> to vector<1x1x1x1xf32>
    %16 = vector.extract %15[0, 0, 0, 0] : f32 from vector<1x1x1x1xf32>
    %17 = vector.broadcast %8 : f32 to vector<1x1x128xf32>
    %c0_3 = arith.constant 0 : index
    %c0_4 = arith.constant 0 : index
    %c0_5 = arith.constant 0 : index
    %18 = vector.load %arg2[%c0_3, %c0_4, %c0_5] : memref<1x1x128xf32, #tpu.memory_space<vmem>>, vector<1x1x128xf32>
    tpu.vector_store %arg2[%c0_3, %c0_4, %c0_5], %17 {strides = array<i32>} : memref<1x1x128xf32, #tpu.memory_space<vmem>>, vector<1x1x128xf32>,
    %19 = vector.broadcast %16 : f32 to vector<1x1x128xf32>
    %c0_6 = arith.constant 0 : index
    %c0_7 = arith.constant 0 : index
    %c0_8 = arith.constant 0 : index
    %20 = vector.load %arg3[%c0_6, %c0_7, %c0_8] : memref<1x1x128xf32, #tpu.memory_space<vmem>>, vector<1x1x128xf32>
    tpu.vector_store %arg3[%c0_6, %c0_7, %c0_8], %19 {strides = array<i32>} : memref<1x1x128xf32, #tpu.memory_space<vmem>>, vector<1x1x128xf32>,
    return
  }
  func.func @transform_0(%arg0: i32) -> (i32, i32, i32) {
    %c0_i32 = arith.constant 0 : i32
    %c0_i32_0 = arith.constant 0 : i32
    %c0_i32_1 = arith.constant 0 : i32
    return %arg0, %c0_i32, %c0_i32_0 : i32, i32, i32
  }
  func.func @transform_1(%arg0: i32) -> (i32, i32, i32) {
    %c0_i32 = arith.constant 0 : i32
    %c0_i32_0 = arith.constant 0 : i32
    %c0_i32_1 = arith.constant 0 : i32
    return %arg0, %c0_i32, %c0_i32_0 : i32, i32, i32
  }
  func.func @transform_2(%arg0: i32) -> (i32, i32, i32) {
    %c0_i32 = arith.constant 0 : i32
    %c0_i32_0 = arith.constant 0 : i32
    %c0_i32_1 = arith.constant 0 : i32
    return %arg0, %c0_i32, %c0_i32_0 : i32, i32, i32
  }
}

</mosaic_0001>

<llo_original>
// kernel: tpu_custom_call.1
$region0: #{tpu_custom_call.1}
  #allocation0 [shape = 'u32[]', space=smem, size = 0x4, offset = 0x4, fixed_abs, tag = 'smem constant byte address 0x4 - core index']
  #allocation1 [shape = 'u32[72,128]{1,0:T(1,128)}', space=vmem, size = 0x9000, scoped, tag = 'internal scratch']
  %s0 = inlined_call_operand.hbm [shape: f32[8,16,16], index: 0, kind: input, shape index: {}]
  %s1 = inlined_call_operand.hbm [shape: f32[1,1,128], index: 1, kind: output, shape index: {0}]
  %s2 = inlined_call_operand.hbm [shape: f32[1,1,128], index: 2, kind: output, shape index: {1}]
  %3 = xla_tuple %s1, %s2
  %s4 = sld [smem:[#allocation0]]
  $region26: #{tpu_custom_call.1} parent=0
    _
  %s6 = ssub.s32 1, %s4
  %s7 = scalar_select 0, %s6, %s4
  $region1: #{tpu_custom_call.1} parent=0
    #allocation2 [shape = 'u8[65536]{0}', space=vmem, size = 0x10000, scoped, tag = 'input window, operand 0, single buffered']
    #allocation3 [shape = 's32[1]{0}', space=sflag, size = 0x4, scoped, tag = 'scoped memory for tpu_custom_call.1']
    #allocation4 [shape = 's32[1]{0}', space=sflag, size = 0x4, scoped, tag = 'scoped memory for tpu_custom_call.1']
    #allocation5 [shape = 'u8[512]{0}', space=vmem, size = 0x400, scoped, tag = 'output window, operand 0, single buffered']
    #allocation6 [shape = 'u8[512]{0}', space=vmem, size = 0x400, scoped, tag = 'output window, operand 1, single buffered']
    #allocation7 [shape = 's32[1]{0}', space=sflag, size = 0x4, scoped, tag = 'scoped memory for tpu_custom_call.1']
    %8 = vsyncpa [#allocation3], 0
    %9 = vsyncpa [#allocation4], 0
    %10 = vsyncpa [#allocation7], 0
    // Predicated region
    $region2: #{tpu_custom_call.1} parent=1 // pred_check
      _
    $region3: #{tpu_custom_call.1} parent=1 // pred_check_branch
      %12 = sbr.rel (0) target = $region5
    $region4: #{tpu_custom_call.1} parent=1 // pred_region
      %14 = vsyncadd [#allocation3], 0
      %s15 = sshll.u32 %s0, 4
      %s16 = int_to_ptr.hbm [resolvable:$true] %s15
      %s17 = sshll.u32 [#allocation2], 4
      %s18 = int_to_ptr.vmem [resolvable:$true] %s17
      %23 = dma.hbm_to_vmem [thread:$0]  %s16, 2048, %s18, [#allocation3], 128, 128, 8
    $region5: #{tpu_custom_call.1} parent=1 // pred_fallthru
      _
    // Predicated region
    $region6: #{tpu_custom_call.1} parent=1 // pred_check
      _
    $region7: #{tpu_custom_call.1} parent=1 // pred_check_branch
      %25 = sbr.rel (0) target = $region9
    $region8: #{tpu_custom_call.1} parent=1 // pred_region
      %27 = dma.done [#allocation3], 2048
    $region9: #{tpu_custom_call.1} parent=1 // pred_fallthru
      _
    %v28 = vld [vmem:[#allocation2] sm:$0xff]
    %v29 = vld [vmem:[#allocation2 + $0x8] sm:$0xff]
    %v30 = vld [vmem:[#allocation2 + $0x10] sm:$0xff]
    %v31 = vld [vmem:[#allocation2 + $0x18] sm:$0xff]
    %v32 = vld [vmem:[#allocation2 + $0x20] sm:$0xff]
    %v33 = vld [vmem:[#allocation2 + $0x28] sm:$0xff]
    %v34 = vld [vmem:[#allocation2 + $0x30] sm:$0xff]
    %v35 = vld [vmem:[#allocation2 + $0x38] sm:$0xff]
    %v36 = vld [vmem:[#allocation2 + $0x40] sm:$0xff]
    %v37 = vld [vmem:[#allocation2 + $0x48] sm:$0xff]
    %v38 = vld [vmem:[#allocation2 + $0x50] sm:$0xff]
    %v39 = vld [vmem:[#allocation2 + $0x58] sm:$0xff]
    %v40 = vld [vmem:[#allocation2 + $0x60] sm:$0xff]
    %v41 = vld [vmem:[#allocation2 + $0x68] sm:$0xff]
    %v42 = vld [vmem:[#allocation2 + $0x70] sm:$0xff]
    %v43 = vld [vmem:[#allocation2 + $0x78] sm:$0xff]
    %vm60 = vcmask 1040384
    %v61 = vrot.slane %v28, 7
    %v62 = vrot.slane %v29, 7
    %v63 = vsel %vm60, %v61, %v62
    %v64 = vrot.slane %v30, 7
    %v65 = vrot.slane %v31, 7
    %v66 = vsel %vm60, %v64, %v65
    %v67 = vrot.slane %v32, 7
    %v68 = vrot.slane %v33, 7
    %v69 = vsel %vm60, %v67, %v68
    %v70 = vrot.slane %v34, 7
    %v71 = vrot.slane %v35, 7
    %v72 = vsel %vm60, %v70, %v71
    %v73 = vrot.slane %v36, 7
    %v74 = vrot.slane %v37, 7
    %v75 = vsel %vm60, %v73, %v74
    %v76 = vrot.slane %v38, 7
    %v77 = vrot.slane %v39, 7
    %v78 = vsel %vm60, %v76, %v77
    %v79 = vrot.slane %v40, 7
    %v80 = vrot.slane %v41, 7
    %v81 = vsel %vm60, %v79, %v80
    %v82 = vrot.slane %v42, 7
    %v83 = vrot.slane %v43, 7
    %v84 = vsel %vm60, %v82, %v83
    %v101 = vsub.f32 %v28, %v61
    %v102 = vsub.f32 %v29, %v63
    %v103 = vsub.f32 %v30, %v64
    %v104 = vsub.f32 %v31, %v66
    %v105 = vsub.f32 %v32, %v67
    %v106 = vsub.f32 %v33, %v69
    %v107 = vsub.f32 %v34, %v70
    %v108 = vsub.f32 %v35, %v72
    %v109 = vsub.f32 %v36, %v73
    %v110 = vsub.f32 %v37, %v75
    %v111 = vsub.f32 %v38, %v76
    %v112 = vsub.f32 %v39, %v78
    %v113 = vsub.f32 %v40, %v79
    %v114 = vsub.f32 %v41, %v81
    %v115 = vsub.f32 %v42, %v82
    %v116 = vsub.f32 %v43, %v84
    %v117 = vmul.f32 %v101, %v101
    %v118 = vmul.f32 %v102, %v102
    %v119 = vmul.f32 %v103, %v103
    %v120 = vmul.f32 %v104, %v104
    %v121 = vmul.f32 %v105, %v105
    %v122 = vmul.f32 %v106, %v106
    %v123 = vmul.f32 %v107, %v107
    %v124 = vmul.f32 %v108, %v108
    %v125 = vmul.f32 %v109, %v109
    %v126 = vmul.f32 %v110, %v110
    %v127 = vmul.f32 %v111, %v111
    %v128 = vmul.f32 %v112, %v112
    %v129 = vmul.f32 %v113, %v113
    %v130 = vmul.f32 %v114, %v114
    %v131 = vmul.f32 %v115, %v115
    %v132 = vmul.f32 %v116, %v116
    %vm149 = vcmask 1046528
    %v150 = vrot.slane %v117, 1
    %v151 = vrot.slane %v118, 1
    %v152 = vsel %vm149, %v150, %v151
    %v153 = vrot.slane %v119, 1
    %v154 = vrot.slane %v120, 1
    %v155 = vsel %vm149, %v153, %v154
    %v156 = vrot.slane %v121, 1
    %v157 = vrot.slane %v122, 1
    %v158 = vsel %vm149, %v156, %v157
    %v159 = vrot.slane %v123, 1
    %v160 = vrot.slane %v124, 1
    %v161 = vsel %vm149, %v159, %v160
    %v162 = vrot.slane %v125, 1
    %v163 = vrot.slane %v126, 1
    %v164 = vsel %vm149, %v162, %v163
    %v165 = vrot.slane %v127, 1
    %v166 = vrot.slane %v128, 1
    %v167 = vsel %vm149, %v165, %v166
    %v168 = vrot.slane %v129, 1
    %v169 = vrot.slane %v130, 1
    %v170 = vsel %vm149, %v168, %v169
    %v171 = vrot.slane %v131, 1
    %v172 = vrot.slane %v132, 1
    %v173 = vsel %vm149, %v171, %v172
    %vm190 = vcmask 130048
    %v191 = vsel %vm190, %v152, 0.0
    %vm192 = vcmask 129024
    %v193 = vsel %vm192, %v151, 0.0
    %v194 = vadd.f32 %v191, %v193
    %v195 = vsel %vm190, %v155, 0.0
    %v196 = vadd.f32 %v194, %v195
    %v197 = vsel %vm192, %v154, 0.0
    %v198 = vadd.f32 %v196, %v197
    %v199 = vsel %vm190, %v158, 0.0
    %v200 = vadd.f32 %v198, %v199
    %v201 = vsel %vm192, %v157, 0.0
    %v202 = vadd.f32 %v200, %v201
    %v203 = vsel %vm190, %v161, 0.0
    %v204 = vadd.f32 %v202, %v203
    %v205 = vsel %vm192, %v160, 0.0
    %v206 = vadd.f32 %v204, %v205
    %v207 = vsel %vm190, %v164, 0.0
    %v208 = vadd.f32 %v206, %v207
    %v209 = vsel %vm192, %v163, 0.0
    %v210 = vadd.f32 %v208, %v209
    %v211 = vsel %vm190, %v167, 0.0
    %v212 = vadd.f32 %v210, %v211
    %v213 = vsel %vm192, %v166, 0.0
    %v214 = vadd.f32 %v212, %v213
    %v215 = vsel %vm190, %v170, 0.0
    %v216 = vadd.f32 %v214, %v215
    %v217 = vsel %vm192, %v169, 0.0
    %v218 = vadd.f32 %v216, %v217
    %v219 = vsel %vm190, %v173, 0.0
    %v220 = vadd.f32 %v218, %v219
    %v221 = vsel %vm192, %v172, 0.0
    %v222 = vadd.f32 %v220, %v221
    %223 = vadd.xlane.f32.xlu0 %v222
    %v224 = vpop.xlane.xlu0 %223
    %v225 = vrot.slane %v224, 4
    %v226 = vadd.f32 %v224, %v225
    %v227 = vrot.slane %v226, 2
    %v228 = vadd.f32 %v226, %v227
    %v229 = vrot.slane %v228, 1
    %v230 = vadd.f32 %v228, %v229
    %s231 = vtos %v230
    %232 = vrot.lane.b32.xlu0 %v28, 1
    %v233 = vpop.permute.xlu0 %232
    %234 = vrot.lane.b32.xlu0 %v29, 1
    %v235 = vpop.permute.xlu0 %234
    %236 = vrot.lane.b32.xlu0 %v30, 1
    %v237 = vpop.permute.xlu0 %236
    %238 = vrot.lane.b32.xlu0 %v31, 1
    %v239 = vpop.permute.xlu0 %238
    %240 = vrot.lane.b32.xlu0 %v32, 1
    %v241 = vpop.permute.xlu0 %240
    %242 = vrot.lane.b32.xlu0 %v33, 1
    %v243 = vpop.permute.xlu0 %242
    %244 = vrot.lane.b32.xlu0 %v34, 1
    %v245 = vpop.permute.xlu0 %244
    %246 = vrot.lane.b32.xlu0 %v35, 1
    %v247 = vpop.permute.xlu0 %246
    %248 = vrot.lane.b32.xlu0 %v36, 1
    %v249 = vpop.permute.xlu0 %248
    %250 = vrot.lane.b32.xlu0 %v37, 1
    %v251 = vpop.permute.xlu0 %250
    %252 = vrot.lane.b32.xlu0 %v38, 1
    %v253 = vpop.permute.xlu0 %252
    %254 = vrot.lane.b32.xlu0 %v39, 1
    %v255 = vpop.permute.xlu0 %254
    %256 = vrot.lane.b32.xlu0 %v40, 1
    %v257 = vpop.permute.xlu0 %256
    %258 = vrot.lane.b32.xlu0 %v41, 1
    %v259 = vpop.permute.xlu0 %258
    %260 = vrot.lane.b32.xlu0 %v42, 1
    %v261 = vpop.permute.xlu0 %260
    %262 = vrot.lane.b32.xlu0 %v43, 1
    %v263 = vpop.permute.xlu0 %262
    %v280 = vsub.f32 %v28, %v233
    %v281 = vsub.f32 %v29, %v235
    %v282 = vsub.f32 %v30, %v237
    %v283 = vsub.f32 %v31, %v239
    %v284 = vsub.f32 %v32, %v241
    %v285 = vsub.f32 %v33, %v243
    %v286 = vsub.f32 %v34, %v245
    %v287 = vsub.f32 %v35, %v247
    %v288 = vsub.f32 %v36, %v249
    %v289 = vsub.f32 %v37, %v251
    %v290 = vsub.f32 %v38, %v253
    %v291 = vsub.f32 %v39, %v255
    %v292 = vsub.f32 %v40, %v257
    %v293 = vsub.f32 %v41, %v259
    %v294 = vsub.f32 %v42, %v261
    %v295 = vsub.f32 %v43, %v263
    %v296 = vmul.f32 %v280, %v280
    %v297 = vmul.f32 %v281, %v281
    %v298 = vmul.f32 %v282, %v282
    %v299 = vmul.f32 %v283, %v283
    %v300 = vmul.f32 %v284, %v284
    %v301 = vmul.f32 %v285, %v285
    %v302 = vmul.f32 %v286, %v286
    %v303 = vmul.f32 %v287, %v287
    %v304 = vmul.f32 %v288, %v288
    %v305 = vmul.f32 %v289, %v289
    %v306 = vmul.f32 %v290, %v290
    %v307 = vmul.f32 %v291, %v291
    %v308 = vmul.f32 %v292, %v292
    %v309 = vmul.f32 %v293, %v293
    %v310 = vmul.f32 %v294, %v294
    %v311 = vmul.f32 %v295, %v295
    %328 = vrot.lane.b32.xlu0 %v296, 127
    %v329 = vpop.permute.xlu0 %328
    %330 = vrot.lane.b32.xlu0 %v297, 127
    %v331 = vpop.permute.xlu0 %330
    %332 = vrot.lane.b32.xlu0 %v298, 127
    %v333 = vpop.permute.xlu0 %332
    %334 = vrot.lane.b32.xlu0 %v299, 127
    %v335 = vpop.permute.xlu0 %334
    %336 = vrot.lane.b32.xlu0 %v300, 127
    %v337 = vpop.permute.xlu0 %336
    %338 = vrot.lane.b32.xlu0 %v301, 127
    %v339 = vpop.permute.xlu0 %338
    %340 = vrot.lane.b32.xlu0 %v302, 127
    %v341 = vpop.permute.xlu0 %340
    %342 = vrot.lane.b32.xlu0 %v303, 127
    %v343 = vpop.permute.xlu0 %342
    %344 = vrot.lane.b32.xlu0 %v304, 127
    %v345 = vpop.permute.xlu0 %344
    %346 = vrot.lane.b32.xlu0 %v305, 127
    %v347 = vpop.permute.xlu0 %346
    %348 = vrot.lane.b32.xlu0 %v306, 127
    %v349 = vpop.permute.xlu0 %348
    %350 = vrot.lane.b32.xlu0 %v307, 127
    %v351 = vpop.permute.xlu0 %350
    %352 = vrot.lane.b32.xlu0 %v308, 127
    %v353 = vpop.permute.xlu0 %352
    %354 = vrot.lane.b32.xlu0 %v309, 127
    %v355 = vpop.permute.xlu0 %354
    %356 = vrot.lane.b32.xlu0 %v310, 127
    %v357 = vpop.permute.xlu0 %356
    %358 = vrot.lane.b32.xlu0 %v311, 127
    %v359 = vpop.permute.xlu0 %358
    %vm376 = vcmask 121856
    %v377 = vsel %vm376, %v329, 0.0
    %v378 = vsel %vm376, %v331, 0.0
    %v379 = vadd.f32 %v377, %v378
    %v380 = vsel %vm376, %v333, 0.0
    %v381 = vadd.f32 %v379, %v380
    %v382 = vsel %vm376, %v335, 0.0
    %v383 = vadd.f32 %v381, %v382
    %v384 = vsel %vm376, %v337, 0.0
    %v385 = vadd.f32 %v383, %v384
    %v386 = vsel %vm376, %v339, 0.0
    %v387 = vadd.f32 %v385, %v386
    %v388 = vsel %vm376, %v341, 0.0
    %v389 = vadd.f32 %v387, %v388
    %v390 = vsel %vm376, %v343, 0.0
    %v391 = vadd.f32 %v389, %v390
    %v392 = vsel %vm376, %v345, 0.0
    %v393 = vadd.f32 %v391, %v392
    %v394 = vsel %vm376, %v347, 0.0
    %v395 = vadd.f32 %v393, %v394
    %v396 = vsel %vm376, %v349, 0.0
    %v397 = vadd.f32 %v395, %v396
    %v398 = vsel %vm376, %v351, 0.0
    %v399 = vadd.f32 %v397, %v398
    %v400 = vsel %vm376, %v353, 0.0
    %v401 = vadd.f32 %v399, %v400
    %v402 = vsel %vm376, %v355, 0.0
    %v403 = vadd.f32 %v401, %v402
    %v404 = vsel %vm376, %v357, 0.0
    %v405 = vadd.f32 %v403, %v404
    %v406 = vsel %vm376, %v359, 0.0
    %v407 = vadd.f32 %v405, %v406
    %408 = vadd.xlane.f32.xlu0 %v407
    %v409 = vpop.xlane.xlu0 %408
    %v410 = vrot.slane %v409, 4
    %v411 = vadd.f32 %v409, %v410
    %v412 = vrot.slane %v411, 2
    %v413 = vadd.f32 %v411, %v412
    %v414 = vrot.slane %v413, 1
    %v415 = vadd.f32 %v413, %v414
    %s416 = vtos %v415
    %v417 = vstv %s231
    %418 = vst [vmem:[#allocation5] sm:$0x1] %v417
    %v419 = vstv %s416
    %420 = vst [vmem:[#allocation6] sm:$0x1] %v419
    // Predicated region
    $region10: #{tpu_custom_call.1} parent=1 // pred_check
      _
    $region11: #{tpu_custom_call.1} parent=1 // pred_check_branch
      %422 = sbr.rel (0) target = $region13
    $region12: #{tpu_custom_call.1} parent=1 // pred_region
      %424 = vsyncadd [#allocation4], 0
      %s426 = sshll.u32 [#allocation5], 4
      %s427 = int_to_ptr.vmem [resolvable:$true] %s426
      %s428 = sshll.u32 %s1, 4
      %s429 = int_to_ptr.hbm [resolvable:$true] %s428
      %431 = dma.vmem_to_hbm [thread:$0]  %s427, 16, %s429, [#allocation4]
    $region13: #{tpu_custom_call.1} parent=1 // pred_fallthru
      _
    // Predicated region
    $region14: #{tpu_custom_call.1} parent=1 // pred_check
      _
    $region15: #{tpu_custom_call.1} parent=1 // pred_check_branch
      %433 = sbr.rel (0) target = $region17
    $region16: #{tpu_custom_call.1} parent=1 // pred_region
      %435 = vsyncadd [#allocation7], 0
      %s437 = sshll.u32 [#allocation6], 4
      %s438 = int_to_ptr.vmem [resolvable:$true] %s437
      %s439 = sshll.u32 %s2, 4
      %s440 = int_to_ptr.hbm [resolvable:$true] %s439
      %442 = dma.vmem_to_hbm [thread:$0]  %s438, 16, %s440, [#allocation7]
    $region17: #{tpu_custom_call.1} parent=1 // pred_fallthru
      _
    // Predicated region
    $region18: #{tpu_custom_call.1} parent=1 // pred_check
      _
    $region19: #{tpu_custom_call.1} parent=1 // pred_check_branch
      %444 = sbr.rel (0) target = $region21
    $region20: #{tpu_custom_call.1} parent=1 // pred_region
      %446 = dma.done [#allocation4], 16
    $region21: #{tpu_custom_call.1} parent=1 // pred_fallthru
      _
    // Predicated region
    $region22: #{tpu_custom_call.1} parent=1 // pred_check
      _
    $region23: #{tpu_custom_call.1} parent=1 // pred_check_branch
      %448 = sbr.rel (0) target = $region25
    $region24: #{tpu_custom_call.1} parent=1 // pred_region
      %450 = dma.done [#allocation7], 16
    $region25: #{tpu_custom_call.1} parent=1 // pred_fallthru
      _
    %451 = vsyncpa [#allocation3], 1
    %452 = vsyncpa [#allocation4], 1
    %453 = vsyncpa [#allocation7], 1

</llo_original>
